<compile_context>
chip_gen: v5e
topology: v5e:2x2
jax: 0.10.0
libtpu: 0.0.40
codegen_flags: <defaults>
</compile_context>

<pallas_src>
import jax
import jax.numpy as jnp
from jax.experimental import pallas as pl
from jax.experimental.pallas import tpu as pltpu

HID_SIZE = 128


def _round_up(n, m):
    return ((n + m - 1) // m) * m


def _a2c_kernel(x_ref, wb_ref, bb_ref, wm_ref, bm_ref, wv_ref, bv_ref,
                ww_ref, bw_ref, mu_ref, var_ref, val_ref):
    # base = ReLU(x @ Wb + bb)   (accumulate in f32 regardless of feed dtype)
    x = x_ref[...].astype(wb_ref.dtype)
    base = jnp.dot(x, wb_ref[...], preferred_element_type=jnp.float32) + bb_ref[...]
    base = jnp.maximum(base, 0.0)
    base_c = base.astype(wm_ref.dtype)

    # mu head: tanh(base @ Wm + bm)
    mu = jnp.dot(base_c, wm_ref[...], preferred_element_type=jnp.float32) + bm_ref[...]
    mu_ref[...] = jnp.tanh(mu).astype(mu_ref.dtype)

    # var head: softplus(base @ Wv + bv)  (PyTorch beta=1, threshold=20)
    v = jnp.dot(base_c, wv_ref[...], preferred_element_type=jnp.float32) + bv_ref[...]
    sp = jnp.where(v > 20.0, v, jnp.log1p(jnp.exp(jnp.minimum(v, 20.0))))
    var_ref[...] = sp.astype(var_ref.dtype)

    # value head: base @ Ww + bw  (no activation)
    val = jnp.dot(base_c, ww_ref[...], preferred_element_type=jnp.float32) + bw_ref[...]
    val_ref[...] = val.astype(val_ref.dtype)


def model_a2c_forward(x, params, *, tile_b=2048, compute_dtype=jnp.float32):
    """x: (B, obs_size) f32.  params: dict of (in, out) weights and (1, out) biases.

    Returns (mu, var, value) with shapes (B, act), (B, act), (B, 1), all float32.
    compute_dtype controls the MXU feed dtype (bf16 recommended on v5e);
    accumulation and activations are always float32.
    """
    B, obs = x.shape
    hid = params["wb"].shape[1]
    act = params["wm"].shape[1]

    cd = compute_dtype
    wb = params["wb"].astype(cd)
    wm = params["wm"].astype(cd)
    wv = params["wv"].astype(cd)
    ww = params["ww"].astype(cd)
    bb, bm, bv, bw = params["bb"], params["bm"], params["bv"], params["bw"]  # f32

    # Batch tile: multiple of 8, at most tile_b, and capped at ~B/2 so the
    # grid has >= 2 steps for large B (lets the "parallel" axis use both v7x cores).
    TB = max(8, min(_round_up(tile_b, 8), _round_up(pl.cdiv(B, 2), 8)))
    grid = (pl.cdiv(B, TB),)  # partial boundary block is masked by Pallas

    head_w = 2 * act + 1
    cost = pl.CostEstimate(
        flops=2 * B * hid * (obs + head_w),
        transcendentals=3 * B * act,  # tanh + exp + log1p per action column
        bytes_accessed=4 * (B * (obs + head_w)
                            + hid * (obs + head_w) + hid + head_w),
    )

    out_shape = (
        jax.ShapeDtypeStruct((B, act), jnp.float32),
        jax.ShapeDtypeStruct((B, act), jnp.float32),
        jax.ShapeDtypeStruct((B, 1), jnp.float32),
    )

    mu, var, val = pl.pallas_call(
        _a2c_kernel,
        out_shape=out_shape,
        grid_spec=pltpu.PrefetchScalarGridSpec(
            num_scalar_prefetch=0,
            grid=grid,
            in_specs=[
                # batch-tiled input
                pl.BlockSpec((TB, obs), lambda i: (i, 0)),
                # resident weights / biases (constant index_maps -> DMA'd once)
                pl.BlockSpec((obs, hid), lambda i: (0, 0)),
                pl.BlockSpec((1, hid), lambda i: (0, 0)),
                pl.BlockSpec((hid, act), lambda i: (0, 0)),
                pl.BlockSpec((1, act), lambda i: (0, 0)),
                pl.BlockSpec((hid, act), lambda i: (0, 0)),
                pl.BlockSpec((1, act), lambda i: (0, 0)),
                pl.BlockSpec((hid, 1), lambda i: (0, 0)),
                pl.BlockSpec((1, 1), lambda i: (0, 0)),
            ],
            out_specs=[
                pl.BlockSpec((TB, act), lambda i: (i, 0)),
                pl.BlockSpec((TB, act), lambda i: (i, 0)),
                pl.BlockSpec((TB, 1), lambda i: (i, 0)),
            ],
        ),
        compiler_params=pltpu.CompilerParams(
            dimension_semantics=("parallel",)),
        cost_estimate=cost,
    )(x, wb, bb, wm, bm, wv, bv, ww, bw)

    return mu, var, val


def init_params(key, obs_size, act_size):
    """Deterministic init mimicking PyTorch nn.Linear default (U[-1/sqrt(fan_in), ...])."""
    def linear(k, fan_in, fan_out):
        kw, kb = jax.random.split(k)
        bound = 1.0 / jnp.sqrt(fan_in)
        w = jax.random.uniform(kw, (fan_in, fan_out), jnp.float32, -bound, bound)
        b = jax.random.uniform(kb, (1, fan_out), jnp.float32, -bound, bound)
        return w, b

    k1, k2, k3, k4 = jax.random.split(key, 4)
    wb, bb = linear(k1, obs_size, HID_SIZE)
    wm, bm = linear(k2, HID_SIZE, act_size)
    wv, bv = linear(k3, HID_SIZE, act_size)
    ww, bw = linear(k4, HID_SIZE, 1)
    return {"wb": wb, "bb": bb, "wm": wm, "bm": bm,
            "wv": wv, "bv": bv, "ww": ww, "bw": bw}


def reference_forward(x, p):
    base = jnp.maximum(x @ p["wb"] + p["bb"], 0.0)
    mu = jnp.tanh(base @ p["wm"] + p["bm"])
    v = base @ p["wv"] + p["bv"]
    var = jnp.where(v > 20.0, v, jnp.log1p(jnp.exp(jnp.minimum(v, 20.0))))
    val = base @ p["ww"] + p["bw"]
    return mu, var, val


if __name__ == "__main__":
    key = jax.random.PRNGKey(0)
    k_x, k_p, k_x2 = jax.random.split(key, 3)

    obs_size = 24   # BipedalWalker observation dim
    act_size = 4    # BipedalWalker action dim

    params = init_params(k_p, obs_size, act_size)

    # Small-batch check (B=2, single partial tile).
    batch = 2
    x = jax.random.normal(k_x, (batch, obs_size), jnp.float32)
    mu, var, val = model_a2c_forward(x, params)
    jax.block_until_ready((mu, var, val))
    mu_r, var_r, val_r = reference_forward(x, params)
    assert mu.shape == (batch, act_size) and var.shape == (batch, act_size) and val.shape == (batch, 1)
    assert jnp.allclose(mu, mu_r, atol=1e-5)
    assert jnp.allclose(var, var_r, atol=1e-5)
    assert jnp.allclose(val, val_r, atol=1e-5)

    # Multi-tile check with a non-divisible batch (exercises the masked
    # partial boundary block and the >=2-step grid).
    batch2 = 300
    x2 = jax.random.normal(k_x2, (batch2, obs_size), jnp.float32)
    mu2, var2, val2 = model_a2c_forward(x2, params, tile_b=128)
    jax.block_until_ready((mu2, var2, val2))
    mu2_r, var2_r, val2_r = reference_forward(x2, params)
    assert jnp.allclose(mu2, mu2_r, atol=1e-5)
    assert jnp.allclose(var2, var2_r, atol=1e-5)
    assert jnp.allclose(val2, val2_r, atol=1e-5)

    # bf16 matmul-feed path (mainly for v5e); f32 accumulation, relaxed tolerance.
    mu3, var3, val3 = model_a2c_forward(x2, params, tile_b=128,
                                        compute_dtype=jnp.bfloat16)
    jax.block_until_ready((mu3, var3, val3))
    assert jnp.allclose(mu3, mu2_r, atol=5e-2)
    assert jnp.allclose(var3, var2_r, atol=5e-2)
    assert jnp.allclose(val3, val2_r, atol=5e-2)

    print("KERNEL_OK")
</pallas_src>

<mosaic_0001>
module attributes {stable_mosaic.version = 11 : i64} {
  func.func @_a2c_kernel(%arg0: i32, %arg1: memref<8x24xf32, #tpu.memory_space<vmem>>, %arg2: memref<24x128xf32, #tpu.memory_space<vmem>>, %arg3: memref<1x128xf32, #tpu.memory_space<vmem>>, %arg4: memref<128x4xf32, #tpu.memory_space<vmem>>, %arg5: memref<1x4xf32, #tpu.memory_space<vmem>>, %arg6: memref<128x4xf32, #tpu.memory_space<vmem>>, %arg7: memref<1x4xf32, #tpu.memory_space<vmem>>, %arg8: memref<128x1xf32, #tpu.memory_space<vmem>>, %arg9: memref<1x1xf32, #tpu.memory_space<vmem>>, %arg10: memref<8x4xf32, #tpu.memory_space<vmem>>, %arg11: memref<8x4xf32, #tpu.memory_space<vmem>>, %arg12: memref<8x1xf32, #tpu.memory_space<vmem>>) attributes {dimension_semantics = [#tpu.dimension_semantics<parallel>], iteration_bounds = array<i64: 1>, scalar_prefetch = 0 : i64, scratch_operands = 0 : i64, tpu.core_type = #tpu.core_type<tc>, window_params = [{transform_indices = @transform_0, window_bounds = array<i64: 8, 24>}, {pipeline_mode = #tpu.pipeline_mode<synchronous>, transform_indices = @transform_1, window_bounds = array<i64: 24, 128>}, {pipeline_mode = #tpu.pipeline_mode<synchronous>, transform_indices = @transform_2, window_bounds = array<i64: 1, 128>}, {pipeline_mode = #tpu.pipeline_mode<synchronous>, transform_indices = @transform_3, window_bounds = array<i64: 128, 4>}, {pipeline_mode = #tpu.pipeline_mode<synchronous>, transform_indices = @transform_4, window_bounds = array<i64: 1, 4>}, {pipeline_mode = #tpu.pipeline_mode<synchronous>, transform_indices = @transform_5, window_bounds = array<i64: 128, 4>}, {pipeline_mode = #tpu.pipeline_mode<synchronous>, transform_indices = @transform_6, window_bounds = array<i64: 1, 4>}, {pipeline_mode = #tpu.pipeline_mode<synchronous>, transform_indices = @transform_7, window_bounds = array<i64: 128, 1>}, {pipeline_mode = #tpu.pipeline_mode<synchronous>, transform_indices = @transform_8, window_bounds = array<i64: 1, 1>}, {transform_indices = @transform_9, window_bounds = array<i64: 8, 4>}, {transform_indices = @transform_10, window_bounds = array<i64: 8, 4>}, {transform_indices = @transform_11, window_bounds = array<i64: 8, 1>}]} {
    %c0 = arith.constant 0 : index
    %c0_0 = arith.constant 0 : index
    %0 = vector.load %arg1[%c0, %c0_0] : memref<8x24xf32, #tpu.memory_space<vmem>>, vector<8x24xf32>
    %c0_1 = arith.constant 0 : index
    %c0_2 = arith.constant 0 : index
    %1 = vector.load %arg2[%c0_1, %c0_2] : memref<24x128xf32, #tpu.memory_space<vmem>>, vector<24x128xf32>
    %cst = arith.constant dense<0.000000e+00> : vector<8x128xf32>
    %2 = tpu.matmul %0, %1, %cst {dimension_numbers = #tpu.dot_dimension_numbers<[1], [0], [0], [1], [0, 0, 1, 1], [], []>} : vector<8x24xf32>, vector<24x128xf32>, vector<8x128xf32> -> vector<8x128xf32>
    %c0_3 = arith.constant 0 : index
    %c0_4 = arith.constant 0 : index
    %3 = vector.load %arg3[%c0_3, %c0_4] : memref<1x128xf32, #tpu.memory_space<vmem>>, vector<1x128xf32>
    %4 = vector.broadcast %3 : vector<1x128xf32> to vector<8x128xf32>
    %5 = arith.addf %2, %4 : vector<8x128xf32>
    %cst_5 = arith.constant 0.000000e+00 : f32
    %6 = vector.broadcast %cst_5 : f32 to vector<8x128xf32>
    %7 = arith.maximumf %5, %6 : vector<8x128xf32>
    %c0_6 = arith.constant 0 : index
    %c0_7 = arith.constant 0 : index
    %8 = vector.load %arg4[%c0_6, %c0_7] : memref<128x4xf32, #tpu.memory_space<vmem>>, vector<128x4xf32>
    %cst_8 = arith.constant dense<0.000000e+00> : vector<8x4xf32>
    %9 = tpu.matmul %7, %8, %cst_8 {dimension_numbers = #tpu.dot_dimension_numbers<[1], [0], [0], [1], [0, 0, 1, 1], [], []>} : vector<8x128xf32>, vector<128x4xf32>, vector<8x4xf32> -> vector<8x4xf32>
    %c0_9 = arith.constant 0 : index
    %c0_10 = arith.constant 0 : index
    %10 = vector.load %arg5[%c0_9, %c0_10] : memref<1x4xf32, #tpu.memory_space<vmem>>, vector<1x4xf32>
    %11 = vector.broadcast %10 : vector<1x4xf32> to vector<8x4xf32>
    %12 = arith.addf %9, %11 : vector<8x4xf32>
    %13 = math.tanh %12 : vector<8x4xf32>
    %c0_11 = arith.constant 0 : index
    %c0_12 = arith.constant 0 : index
    %14 = vector.load %arg10[%c0_11, %c0_12] : memref<8x4xf32, #tpu.memory_space<vmem>>, vector<8x4xf32>
    tpu.vector_store %arg10[%c0_11, %c0_12], %13 {strides = array<i32>} : memref<8x4xf32, #tpu.memory_space<vmem>>, vector<8x4xf32>,
    %c0_13 = arith.constant 0 : index
    %c0_14 = arith.constant 0 : index
    %15 = vector.load %arg6[%c0_13, %c0_14] : memref<128x4xf32, #tpu.memory_space<vmem>>, vector<128x4xf32>
    %cst_15 = arith.constant dense<0.000000e+00> : vector<8x4xf32>
    %16 = tpu.matmul %7, %15, %cst_15 {dimension_numbers = #tpu.dot_dimension_numbers<[1], [0], [0], [1], [0, 0, 1, 1], [], []>} : vector<8x128xf32>, vector<128x4xf32>, vector<8x4xf32> -> vector<8x4xf32>
    %c0_16 = arith.constant 0 : index
    %c0_17 = arith.constant 0 : index
    %17 = vector.load %arg7[%c0_16, %c0_17] : memref<1x4xf32, #tpu.memory_space<vmem>>, vector<1x4xf32>
    %18 = vector.broadcast %17 : vector<1x4xf32> to vector<8x4xf32>
    %19 = arith.addf %16, %18 : vector<8x4xf32>
    %cst_18 = arith.constant 2.000000e+01 : f32
    %20 = vector.broadcast %cst_18 : f32 to vector<8x4xf32>
    %21 = arith.cmpf ogt, %19, %20 : vector<8x4xf32>
    %cst_19 = arith.constant 2.000000e+01 : f32
    %22 = vector.broadcast %cst_19 : f32 to vector<8x4xf32>
    %23 = arith.minimumf %19, %22 : vector<8x4xf32>
    %24 = math.exp %23 : vector<8x4xf32>
    %25 = math.log1p %24 : vector<8x4xf32>
    %26 = arith.select %21, %19, %25 : vector<8x4xi1>, vector<8x4xf32>
    %c0_20 = arith.constant 0 : index
    %c0_21 = arith.constant 0 : index
    %27 = vector.load %arg11[%c0_20, %c0_21] : memref<8x4xf32, #tpu.memory_space<vmem>>, vector<8x4xf32>
    tpu.vector_store %arg11[%c0_20, %c0_21], %26 {strides = array<i32>} : memref<8x4xf32, #tpu.memory_space<vmem>>, vector<8x4xf32>,
    %c0_22 = arith.constant 0 : index
    %c0_23 = arith.constant 0 : index
    %28 = vector.load %arg8[%c0_22, %c0_23] : memref<128x1xf32, #tpu.memory_space<vmem>>, vector<128x1xf32>
    %cst_24 = arith.constant dense<0.000000e+00> : vector<8x1xf32>
    %29 = tpu.matmul %7, %28, %cst_24 {dimension_numbers = #tpu.dot_dimension_numbers<[1], [0], [0], [1], [0, 0, 1, 1], [], []>} : vector<8x128xf32>, vector<128x1xf32>, vector<8x1xf32> -> vector<8x1xf32>
    %c0_25 = arith.constant 0 : index
    %c0_26 = arith.constant 0 : index
    %30 = vector.load %arg9[%c0_25, %c0_26] : memref<1x1xf32, #tpu.memory_space<vmem>>, vector<1x1xf32>
    %31 = vector.broadcast %30 : vector<1x1xf32> to vector<8x1xf32>
    %32 = arith.addf %29, %31 : vector<8x1xf32>
    %c0_27 = arith.constant 0 : index
    %c0_28 = arith.constant 0 : index
    %33 = vector.load %arg12[%c0_27, %c0_28] : memref<8x1xf32, #tpu.memory_space<vmem>>, vector<8x1xf32>
    tpu.vector_store %arg12[%c0_27, %c0_28], %32 {strides = array<i32>} : memref<8x1xf32, #tpu.memory_space<vmem>>, vector<8x1xf32>,
    return
  }
  func.func @transform_0(%arg0: i32) -> (i32, i32) {
    %c0_i32 = arith.constant 0 : i32
    %c0_i32_0 = arith.constant 0 : i32
    return %arg0, %c0_i32 : i32, i32
  }
  func.func @transform_1(%arg0: i32) -> (i32, i32) {
    %c0_i32 = arith.constant 0 : i32
    %c0_i32_0 = arith.constant 0 : i32
    %c0_i32_1 = arith.constant 0 : i32
    return %c0_i32, %c0_i32_0 : i32, i32
  }
  func.func @transform_2(%arg0: i32) -> (i32, i32) {
    %c0_i32 = arith.constant 0 : i32
    %c0_i32_0 = arith.constant 0 : i32
    %c0_i32_1 = arith.constant 0 : i32
    return %c0_i32, %c0_i32_0 : i32, i32
  }
  func.func @transform_3(%arg0: i32) -> (i32, i32) {
    %c0_i32 = arith.constant 0 : i32
    %c0_i32_0 = arith.constant 0 : i32
    %c0_i32_1 = arith.constant 0 : i32
    return %c0_i32, %c0_i32_0 : i32, i32
  }
  func.func @transform_4(%arg0: i32) -> (i32, i32) {
    %c0_i32 = arith.constant 0 : i32
    %c0_i32_0 = arith.constant 0 : i32
    %c0_i32_1 = arith.constant 0 : i32
    return %c0_i32, %c0_i32_0 : i32, i32
  }
  func.func @transform_5(%arg0: i32) -> (i32, i32) {
    %c0_i32 = arith.constant 0 : i32
    %c0_i32_0 = arith.constant 0 : i32
    %c0_i32_1 = arith.constant 0 : i32
    return %c0_i32, %c0_i32_0 : i32, i32
  }
  func.func @transform_6(%arg0: i32) -> (i32, i32) {
    %c0_i32 = arith.constant 0 : i32
    %c0_i32_0 = arith.constant 0 : i32
    %c0_i32_1 = arith.constant 0 : i32
    return %c0_i32, %c0_i32_0 : i32, i32
  }
  func.func @transform_7(%arg0: i32) -> (i32, i32) {
    %c0_i32 = arith.constant 0 : i32
    %c0_i32_0 = arith.constant 0 : i32
    %c0_i32_1 = arith.constant 0 : i32
    return %c0_i32, %c0_i32_0 : i32, i32
  }
  func.func @transform_8(%arg0: i32) -> (i32, i32) {
    %c0_i32 = arith.constant 0 : i32
    %c0_i32_0 = arith.constant 0 : i32
    %c0_i32_1 = arith.constant 0 : i32
    return %c0_i32, %c0_i32_0 : i32, i32
  }
  func.func @transform_9(%arg0: i32) -> (i32, i32) {
    %c0_i32 = arith.constant 0 : i32
    %c0_i32_0 = arith.constant 0 : i32
    return %arg0, %c0_i32 : i32, i32
  }
  func.func @transform_10(%arg0: i32) -> (i32, i32) {
    %c0_i32 = arith.constant 0 : i32
    %c0_i32_0 = arith.constant 0 : i32
    return %arg0, %c0_i32 : i32, i32
  }
  func.func @transform_11(%arg0: i32) -> (i32, i32) {
    %c0_i32 = arith.constant 0 : i32
    %c0_i32_0 = arith.constant 0 : i32
    return %arg0, %c0_i32 : i32, i32
  }
}

</mosaic_0001>

<llo_original>
// kernel: tpu_custom_call.1
$region0: #{tpu_custom_call.1}
  #allocation0 [shape = 'u32[]', space=smem, size = 0x4, offset = 0x4, fixed_abs, tag = 'smem constant byte address 0x4 - core index']
  #allocation1 [shape = 'u32[72,128]{1,0:T(1,128)}', space=vmem, size = 0x9000, scoped, tag = 'internal scratch']
  #allocation2 [shape = 'f32[1,1]{1,0:T(1,128)S(1)}', space=vmem, size = 0x200, scoped, tag = 'scoped memory for tpu_custom_call.1']
  %s0 = inlined_call_operand.vmem [shape: f32[2,24], index: 0, kind: input, shape index: {}]
  %s1 = inlined_call_operand.vmem [shape: f32[24,128], index: 1, kind: input, shape index: {}]
  %s2 = inlined_call_operand.vmem [shape: f32[1,128], index: 2, kind: input, shape index: {}]
  %s3 = inlined_call_operand.vmem [shape: f32[128,4], index: 3, kind: input, shape index: {}]
  %s4 = inlined_call_operand.vmem [shape: f32[1,4], index: 4, kind: input, shape index: {}]
  %s5 = inlined_call_operand.vmem [shape: f32[128,4], index: 5, kind: input, shape index: {}]
  %s6 = inlined_call_operand.vmem [shape: f32[1,4], index: 6, kind: input, shape index: {}]
  %s7 = inlined_call_operand.vmem [shape: f32[128,1], index: 7, kind: input, shape index: {}]
  %s8 = inlined_call_operand.<no memory space> [shape: f32[1,1], index: 8, kind: input, shape index: {}]
  %s9 = inlined_call_operand.hbm [shape: f32[2,4], index: 9, kind: output, shape index: {0}]
  %s10 = inlined_call_operand.hbm [shape: f32[2,4], index: 10, kind: output, shape index: {1}]
  %s11 = inlined_call_operand.vmem [shape: f32[2,1], index: 11, kind: output, shape index: {2}]
  %12 = xla_tuple %s9, %s10, %s11
  %s13 = sld [smem:[#allocation0]]
  $region92: #{tpu_custom_call.1} parent=0
    _
  %s15 = ssub.s32 1, %s13
  %s16 = scalar_select 0, %s15, %s13
  %v17 = vstv %s8
  %18 = vst [vmem:[#allocation2] sm:$0x1] %v17
  $region1: #{tpu_custom_call.1} parent=0
    #allocation3 [shape = 'u8[4096]{0}', space=vmem, size = 0x1000, scoped, tag = 'output window, operand 0, single buffered']
    #allocation4 [shape = 's32[1]{0}', space=sflag, size = 0x4, scoped, tag = 'scoped memory for tpu_custom_call.1']
    #allocation5 [shape = 'u8[4096]{0}', space=vmem, size = 0x1000, scoped, tag = 'output window, operand 1, single buffered']
    #allocation6 [shape = 's32[1]{0}', space=sflag, size = 0x4, scoped, tag = 'scoped memory for tpu_custom_call.1']
    #allocation7 [shape = 'u8[4096]{0}', space=vmem, size = 0x1000, scoped, tag = 'output window, operand 2, single buffered']
    %19 = vsyncpa [#allocation4], 0
    %20 = vsyncpa [#allocation6], 0
    // Predicated region
    $region2: #{tpu_custom_call.1} parent=1 // pred_check
      _
    $region3: #{tpu_custom_call.1} parent=1 // pred_check_branch
      %22 = sbr.rel (0) target = $region5
    $region4: #{tpu_custom_call.1} parent=1 // pred_region
      _
    $region5: #{tpu_custom_call.1} parent=1 // pred_fallthru
      _
    // Predicated region
    $region6: #{tpu_custom_call.1} parent=1 // pred_check
      _
    $region7: #{tpu_custom_call.1} parent=1 // pred_check_branch
      %24 = sbr.rel (0) target = $region9
    $region8: #{tpu_custom_call.1} parent=1 // pred_region
      _
    $region9: #{tpu_custom_call.1} parent=1 // pred_fallthru
      _
    // Predicated region
    $region10: #{tpu_custom_call.1} parent=1 // pred_check
      _
    $region11: #{tpu_custom_call.1} parent=1 // pred_check_branch
      %26 = sbr.rel (0) target = $region13
    $region12: #{tpu_custom_call.1} parent=1 // pred_region
      _
    $region13: #{tpu_custom_call.1} parent=1 // pred_fallthru
      _
    // Predicated region
    $region14: #{tpu_custom_call.1} parent=1 // pred_check
      _
    $region15: #{tpu_custom_call.1} parent=1 // pred_check_branch
      %28 = sbr.rel (0) target = $region17
    $region16: #{tpu_custom_call.1} parent=1 // pred_region
      _
    $region17: #{tpu_custom_call.1} parent=1 // pred_fallthru
      _
    // Predicated region
    $region18: #{tpu_custom_call.1} parent=1 // pred_check
      _
    $region19: #{tpu_custom_call.1} parent=1 // pred_check_branch
      %30 = sbr.rel (0) target = $region21
    $region20: #{tpu_custom_call.1} parent=1 // pred_region
      _
    $region21: #{tpu_custom_call.1} parent=1 // pred_fallthru
      _
    // Predicated region
    $region22: #{tpu_custom_call.1} parent=1 // pred_check
      _
    $region23: #{tpu_custom_call.1} parent=1 // pred_check_branch
      %32 = sbr.rel (0) target = $region25
    $region24: #{tpu_custom_call.1} parent=1 // pred_region
      _
    $region25: #{tpu_custom_call.1} parent=1 // pred_fallthru
      _
    // Predicated region
    $region26: #{tpu_custom_call.1} parent=1 // pred_check
      _
    $region27: #{tpu_custom_call.1} parent=1 // pred_check_branch
      %34 = sbr.rel (0) target = $region29
    $region28: #{tpu_custom_call.1} parent=1 // pred_region
      _
    $region29: #{tpu_custom_call.1} parent=1 // pred_fallthru
      _
    // Predicated region
    $region30: #{tpu_custom_call.1} parent=1 // pred_check
      _
    $region31: #{tpu_custom_call.1} parent=1 // pred_check_branch
      %36 = sbr.rel (0) target = $region33
    $region32: #{tpu_custom_call.1} parent=1 // pred_region
      _
    $region33: #{tpu_custom_call.1} parent=1 // pred_fallthru
      _
    // Predicated region
    $region34: #{tpu_custom_call.1} parent=1 // pred_check
      _
    $region35: #{tpu_custom_call.1} parent=1 // pred_check_branch
      %38 = sbr.rel (0) target = $region37
    $region36: #{tpu_custom_call.1} parent=1 // pred_region
      _
    $region37: #{tpu_custom_call.1} parent=1 // pred_fallthru
      _
    %v39 = vld [vmem:[%s0] sm:$0xff]
    %v40 = vld [vmem:[%s1] sm:$0xff]
    %v41 = vld [vmem:[%s1 + $0x8] sm:$0xff]
    %v42 = vld [vmem:[%s1 + $0x10] sm:$0xff]
    %v43 = vld [vmem:[%s2] sm:$0x1]
    %v45 = vperm.slane %v43, 0
    %vm47 = vcmask 195584
    %v49 = vsel %vm47, %v39, 0
    %51 = vmatpush.msra.mxu0 0.0
    %52 = vmatpush.msra.mxu0 0.0
    %53 = vmatpush.msra.mxu0 0.0
    %54 = vmatpush.msra.mxu0 0.0
    %55 = vmatpush.msra.mxu0 0.0
    %56 = vmatpush.msra.mxu0 0.0
    %57 = vmatpush.msra.mxu0 0.0
    %58 = vmatpush.msra.mxu0 0.0
    %59 = vmatpush.msra.mxu0 0.0
    %60 = vmatpush.msra.mxu0 0.0
    %61 = vmatpush.msra.mxu0 0.0
    %62 = vmatpush.msra.mxu0 0.0
    %63 = vmatpush.msra.mxu0 0.0
    %64 = vmatpush.msra.mxu0 %v42
    %65 = vmatpush.msra.mxu0 %v41
    %66 = vmatpush.msra.mxu0 %v40
    %67 = vmatmul.f32.gmra.mxu0 %v49
    %v68 = vpop.f32.mrf.mxu0
    %v69 = vadd.f32 %v45, %v68
    %70 = vdwg.mxu0
    %v71 = vmax.f32 %v69, 0.0
    %v72 = vld [vmem:[%s3] sm:$0xff]
    %v73 = vld [vmem:[%s3 + $0x8] sm:$0xff]
    %v74 = vld [vmem:[%s3 + $0x10] sm:$0xff]
    %v75 = vld [vmem:[%s3 + $0x18] sm:$0xff]
    %v76 = vld [vmem:[%s3 + $0x20] sm:$0xff]
    %v77 = vld [vmem:[%s3 + $0x28] sm:$0xff]
    %v78 = vld [vmem:[%s3 + $0x30] sm:$0xff]
    %v79 = vld [vmem:[%s3 + $0x38] sm:$0xff]
    %v80 = vld [vmem:[%s3 + $0x40] sm:$0xff]
    %v81 = vld [vmem:[%s3 + $0x48] sm:$0xff]
    %v82 = vld [vmem:[%s3 + $0x50] sm:$0xff]
    %v83 = vld [vmem:[%s3 + $0x58] sm:$0xff]
    %v84 = vld [vmem:[%s3 + $0x60] sm:$0xff]
    %v85 = vld [vmem:[%s3 + $0x68] sm:$0xff]
    %v86 = vld [vmem:[%s3 + $0x70] sm:$0xff]
    %v87 = vld [vmem:[%s3 + $0x78] sm:$0xff]
    %v88 = vld [vmem:[%s4] sm:$0x1]
    %v90 = vperm.slane %v88, 0
    %92 = vmatpush.msra.mxu0 %v87
    %93 = vmatpush.msra.mxu0 %v86
    %94 = vmatpush.msra.mxu0 %v85
    %95 = vmatpush.msra.mxu0 %v84
    %96 = vmatpush.msra.mxu0 %v83
    %97 = vmatpush.msra.mxu0 %v82
    %98 = vmatpush.msra.mxu0 %v81
    %99 = vmatpush.msra.mxu0 %v80
    %100 = vmatpush.msra.mxu0 %v79
    %101 = vmatpush.msra.mxu0 %v78
    %102 = vmatpush.msra.mxu0 %v77
    %103 = vmatpush.msra.mxu0 %v76
    %104 = vmatpush.msra.mxu0 %v75
    %105 = vmatpush.msra.mxu0 %v74
    %106 = vmatpush.msra.mxu0 %v73
    %107 = vmatpush.msra.mxu0 %v72
    %108 = vmatmul.f32.gmra.mxu0 %v71
    %v109 = vpop.f32.mrf.mxu0
    %v110 = vadd.f32 %v90, %v109
    %111 = vdwg.mxu0
    %v112 = vtanh.pop %v110
    %vm113 = vcmask 31744
    %114 = vst.msk [vmem:[#allocation3] sm:$0xff] %vm113, %v112
    %v115 = vld [vmem:[%s5] sm:$0xff]
    %v116 = vld [vmem:[%s5 + $0x8] sm:$0xff]
    %v117 = vld [vmem:[%s5 + $0x10] sm:$0xff]
    %v118 = vld [vmem:[%s5 + $0x18] sm:$0xff]
    %v119 = vld [vmem:[%s5 + $0x20] sm:$0xff]
    %v120 = vld [vmem:[%s5 + $0x28] sm:$0xff]
    %v121 = vld [vmem:[%s5 + $0x30] sm:$0xff]
    %v122 = vld [vmem:[%s5 + $0x38] sm:$0xff]
    %v123 = vld [vmem:[%s5 + $0x40] sm:$0xff]
    %v124 = vld [vmem:[%s5 + $0x48] sm:$0xff]
    %v125 = vld [vmem:[%s5 + $0x50] sm:$0xff]
    %v126 = vld [vmem:[%s5 + $0x58] sm:$0xff]
    %v127 = vld [vmem:[%s5 + $0x60] sm:$0xff]
    %v128 = vld [vmem:[%s5 + $0x68] sm:$0xff]
    %v129 = vld [vmem:[%s5 + $0x70] sm:$0xff]
    %v130 = vld [vmem:[%s5 + $0x78] sm:$0xff]
    %v131 = vld [vmem:[%s6] sm:$0x1]
    %v133 = vperm.slane %v131, 0
    %135 = vmatpush.msra.mxu0 %v130
    %136 = vmatpush.msra.mxu0 %v129
    %137 = vmatpush.msra.mxu0 %v128
    %138 = vmatpush.msra.mxu0 %v127
    %139 = vmatpush.msra.mxu0 %v126
    %140 = vmatpush.msra.mxu0 %v125
    %141 = vmatpush.msra.mxu0 %v124
    %142 = vmatpush.msra.mxu0 %v123
    %143 = vmatpush.msra.mxu0 %v122
    %144 = vmatpush.msra.mxu0 %v121
    %145 = vmatpush.msra.mxu0 %v120
    %146 = vmatpush.msra.mxu0 %v119
    %147 = vmatpush.msra.mxu0 %v118
    %148 = vmatpush.msra.mxu0 %v117
    %149 = vmatpush.msra.mxu0 %v116
    %150 = vmatpush.msra.mxu0 %v115
    %151 = vmatmul.f32.gmra.mxu0 %v71
    %v152 = vpop.f32.mrf.mxu0
    %v153 = vadd.f32 %v133, %v152
    %154 = vdwg.mxu0
    %vm155 = vcmp.gt.f32.partialorder %v153, 20.0
    %v156 = vmin.f32 %v153, 20.0
    %v157 = vmul.f32 %v156, 1.442695
    %v158 = vpow.pop %v157
    %v159 = vadd.f32 %v158, 1.0
    %v160 = vlog2.pop %v159
    %v161 = vmul.f32 %v160, 0.6931472
    %v162 = vmul.f32 -0.5, %v158
    %v163 = vadd.f32 %v162, 1.0
    %v164 = vmul.f32 %v163, %v158
    %v165 = vand.u32 2147483647, %v158
    %vm166 = vcmp.lt.f32.partialorder %v165, 0.0004427343
    %v167 = vsel %vm166, %v164, %v161
    %v168 = vsel %vm155, %v153, %v167
    %169 = vst.msk [vmem:[#allocation5] sm:$0xff] %vm113, %v168
    %v170 = vld [vmem:[%s7] sm:$0xff]
    %v171 = vld [vmem:[%s7 + $0x8] sm:$0xff]
    %v172 = vld [vmem:[%s7 + $0x10] sm:$0xff]
    %v173 = vld [vmem:[%s7 + $0x18] sm:$0xff]
    %v174 = vld [vmem:[%s7 + $0x20] sm:$0xff]
    %v175 = vld [vmem:[%s7 + $0x28] sm:$0xff]
    %v176 = vld [vmem:[%s7 + $0x30] sm:$0xff]
    %v177 = vld [vmem:[%s7 + $0x38] sm:$0xff]
    %v178 = vld [vmem:[%s7 + $0x40] sm:$0xff]
    %v179 = vld [vmem:[%s7 + $0x48] sm:$0xff]
    %v180 = vld [vmem:[%s7 + $0x50] sm:$0xff]
    %v181 = vld [vmem:[%s7 + $0x58] sm:$0xff]
    %v182 = vld [vmem:[%s7 + $0x60] sm:$0xff]
    %v183 = vld [vmem:[%s7 + $0x68] sm:$0xff]
    %v184 = vld [vmem:[%s7 + $0x70] sm:$0xff]
    %v185 = vld [vmem:[%s7 + $0x78] sm:$0xff]
    %v186 = vld [vmem:[#allocation2] sm:$0x1]
    %v188 = vperm.slane %v186, 0
    %190 = vmatpush.msra.mxu0 %v185
    %191 = vmatpush.msra.mxu0 %v184
    %192 = vmatpush.msra.mxu0 %v183
    %193 = vmatpush.msra.mxu0 %v182
    %194 = vmatpush.msra.mxu0 %v181
    %195 = vmatpush.msra.mxu0 %v180
    %196 = vmatpush.msra.mxu0 %v179
    %197 = vmatpush.msra.mxu0 %v178
    %198 = vmatpush.msra.mxu0 %v177
    %199 = vmatpush.msra.mxu0 %v176
    %200 = vmatpush.msra.mxu0 %v175
    %201 = vmatpush.msra.mxu0 %v174
    %202 = vmatpush.msra.mxu0 %v173
    %203 = vmatpush.msra.mxu0 %v172
    %204 = vmatpush.msra.mxu0 %v171
    %205 = vmatpush.msra.mxu0 %v170
    %206 = vmatmul.f32.gmra.mxu0 %v71
    %v207 = vpop.f32.mrf.mxu0
    %v208 = vadd.f32 %v188, %v207
    %209 = vdwg.mxu0
    %vm210 = vcmask 7168
    %211 = vst.msk [vmem:[#allocation7] sm:$0xff] %vm210, %v208
    // Predicated region
    $region38: #{tpu_custom_call.1} parent=1 // pred_check
      _
    $region39: #{tpu_custom_call.1} parent=1 // pred_check_branch
      %213 = sbr.rel (0) target = $region41
    $region40: #{tpu_custom_call.1} parent=1 // pred_region
      %215 = vsyncadd [#allocation4], 96
      %s216 = sshll.u32 [#allocation3], 4
      %s217 = int_to_ptr.vmem [resolvable:$true] %s216
      %s218 = sshll.u32 %s9, 4
      %s219 = int_to_ptr.hbm [resolvable:$true] %s218
      %224 = dma.vmem_to_hbm [thread:$0]  %s217, 32, %s219, [#allocation4], 32, 32, 2
    $region41: #{tpu_custom_call.1} parent=1 // pred_fallthru
      _
    // Predicated region
    $region42: #{tpu_custom_call.1} parent=1 // pred_check
      _
    $region43: #{tpu_custom_call.1} parent=1 // pred_check_branch
      %226 = sbr.rel (0) target = $region45
    $region44: #{tpu_custom_call.1} parent=1 // pred_region
      %228 = vsyncadd [#allocation6], 96
      %s229 = sshll.u32 [#allocation5], 4
      %s230 = int_to_ptr.vmem [resolvable:$true] %s229
      %s231 = sshll.u32 %s10, 4
      %s232 = int_to_ptr.hbm [resolvable:$true] %s231
      %237 = dma.vmem_to_hbm [thread:$0]  %s230, 32, %s232, [#allocation6], 32, 32, 2
    $region45: #{tpu_custom_call.1} parent=1 // pred_fallthru
      _
    // Predicated region
    $region46: #{tpu_custom_call.1} parent=1 // pred_check
      _
    $region47: #{tpu_custom_call.1} parent=1 // pred_check_branch
      %239 = sbr.rel (0) target = $region49
    $region48: #{tpu_custom_call.1} parent=1 // pred_region
      // Predicated region
      $region50: #{tpu_custom_call.1} parent=48 // pred_check
        _
      $region51: #{tpu_custom_call.1} parent=48 // pred_check_branch
        %241 = sbr.rel (0) target = $region53
      $region52: #{tpu_custom_call.1} parent=48 // pred_region
        // Predicated region
        $region54: #{tpu_custom_call.1} parent=52 // pred_check
          _
        $region55: #{tpu_custom_call.1} parent=52 // pred_check_branch
          %243 = sbr.rel target = $region57
        $region56: #{tpu_custom_call.1} parent=52 // pred_region
          // Predicated region
          $region69: #{tpu_custom_call.1} parent=56 // pred_check
            _
          $region70: #{tpu_custom_call.1} parent=56 // pred_check_branch
            %259 = sbr.rel (0) target = $region72
          $region71: #{tpu_custom_call.1} parent=56 // pred_region
            %s261 = ssub.s32 4, 1
            loop: start=0, step=1, limit=1
            $region73: #{tpu_custom_call.1} parent=71 // loop_pre_header
              _
            $region74: #{tpu_custom_call.1} parent=71 // loop_header
              %s263 = sphi 0, %s267
              %p264 = scmp.ge.s32.totalorder %s263, 1
              %s268 = sphi [#allocation7], [#allocation7]
              %s269 = sphi %s11, %s11
            $region75: #{tpu_custom_call.1} parent=71 // loop_header_branch
              %266 = sbr.rel (%p264) target = $region79
            $region76: #{tpu_custom_call.1} parent=71 // loop_body
              %v270 = vld [vmem:[%s268] sm:%s261]
              %271 = vst [vmem:[%s269] sm:%s261] %v270
            $region77: #{tpu_custom_call.1} parent=71 // loop_footer
              %s267 = sadd.s32 1, %s263
            $region78: #{tpu_custom_call.1} parent=71 // loop_footer_branch
              %262 = sbr.rel target = $region74
            $region79: #{tpu_custom_call.1} parent=71 // loop_exit
              _
          $region72: #{tpu_custom_call.1} parent=56 // pred_fallthru
            _
        $region57: #{tpu_custom_call.1} parent=52 // pred_fallthru
          _
        // Predicated region
        $region58: #{tpu_custom_call.1} parent=52 // pred_check
          _
        $region59: #{tpu_custom_call.1} parent=52 // pred_check_branch
          %245 = sbr.rel (0) target = $region61
        $region60: #{tpu_custom_call.1} parent=52 // pred_region
          %s247 = ssub.s32 4, 1
          loop: start=0, step=1, limit=1
          $region62: #{tpu_custom_call.1} parent=60 // loop_pre_header
            _
          $region63: #{tpu_custom_call.1} parent=60 // loop_header
            %s249 = sphi 0, %s253
            %p250 = scmp.ge.s32.totalorder %s249, 1
            %s254 = sphi [#allocation7], [#allocation7]
            %s255 = sphi %s11, %s11
          $region64: #{tpu_custom_call.1} parent=60 // loop_header_branch
            %252 = sbr.rel (%p250) target = $region68
          $region65: #{tpu_custom_call.1} parent=60 // loop_body
            %v256 = vld [vmem:[%s254] sm:%s247]
            %257 = vst [vmem:[%s255] sm:%s247] %v256
          $region66: #{tpu_custom_call.1} parent=60 // loop_footer
            %s253 = sadd.s32 1, %s249
          $region67: #{tpu_custom_call.1} parent=60 // loop_footer_branch
            %248 = sbr.rel target = $region63
          $region68: #{tpu_custom_call.1} parent=60 // loop_exit
            _
        $region61: #{tpu_custom_call.1} parent=52 // pred_fallthru
          _
      $region53: #{tpu_custom_call.1} parent=48 // pred_fallthru
        _
      %272 = vnop
    $region49: #{tpu_custom_call.1} parent=1 // pred_fallthru
      _
    // Predicated region
    $region80: #{tpu_custom_call.1} parent=1 // pred_check
      _
    $region81: #{tpu_custom_call.1} parent=1 // pred_check_branch
      %274 = sbr.rel (0) target = $region83
    $region82: #{tpu_custom_call.1} parent=1 // pred_region
      %276 = dma.done [#allocation4], 128
    $region83: #{tpu_custom_call.1} parent=1 // pred_fallthru
      _
    // Predicated region
    $region84: #{tpu_custom_call.1} parent=1 // pred_check
      _
    $region85: #{tpu_custom_call.1} parent=1 // pred_check_branch
      %278 = sbr.rel (0) target = $region87
    $region86: #{tpu_custom_call.1} parent=1 // pred_region
      %280 = dma.done [#allocation6], 128
    $region87: #{tpu_custom_call.1} parent=1 // pred_fallthru
      _
    // Predicated region
    $region88: #{tpu_custom_call.1} parent=1 // pred_check
      _
    $region89: #{tpu_custom_call.1} parent=1 // pred_check_branch
      %282 = sbr.rel (0) target = $region91
    $region90: #{tpu_custom_call.1} parent=1 // pred_region
      _
    $region91: #{tpu_custom_call.1} parent=1 // pred_fallthru
      _
    %283 = vsyncpa [#allocation4], 1
    %284 = vsyncpa [#allocation6], 1

</llo_original>
